<compile_context>
chip_gen: v7x
topology: tpu7x:2x2x1
jax: 0.10.0
libtpu: 0.0.40
codegen_flags: <defaults>
</compile_context>

<pallas_src>
import math
import jax
import jax.numpy as jnp
from jax.experimental import pallas as pl
from jax.experimental.pallas import tpu as pltpu

N_INPUTS = 3
N_HIDDEN = 4
N_HIDDEN2 = 2 * N_HIDDEN
N_OUTPUT = 2

LANES = 128
SUBLANES = 8


def mlp_softmax_kernel(x_ref, w1_ref, b1_ref, w2_ref, b2_ref, w3_ref, b3_ref, o_ref):
    # x_ref: (N_INPUTS, R, 128) f32 in VMEM -- batch packed across sublanes AND lanes.
    # w*/b*: tiny (K, N) / (1, N) f32 tables in SMEM -> scalar reads.
    # o_ref: (N_OUTPUT, R, 128) f32 in VMEM.
    xs = [x_ref[k] for k in range(N_INPUTS)]  # each (R, 128), fully packed vregs

    # Linear(3 -> 4) + ReLU (bias folded into accumulator init; VPU scalar*slab FMAs).
    h1 = []
    for j in range(N_HIDDEN):
        acc = xs[0] * w1_ref[0, j] + b1_ref[0, j]
        for k in range(1, N_INPUTS):
            acc = acc + xs[k] * w1_ref[k, j]
        h1.append(jnp.maximum(acc, 0.0))

    # Linear(4 -> 8) + ReLU, fused with Linear(8 -> 2): each h2[j] is consumed immediately,
    # so only one h2 slab is ever live (keeps vreg/VMEM pressure low).
    logit0 = None
    logit1 = None
    for j in range(N_HIDDEN2):
        acc = h1[0] * w2_ref[0, j] + b2_ref[0, j]
        for k in range(1, N_HIDDEN):
            acc = acc + h1[k] * w2_ref[k, j]
        h2j = jnp.maximum(acc, 0.0)
        if j == 0:
            logit0 = h2j * w3_ref[0, 0] + b3_ref[0, 0]
            logit1 = h2j * w3_ref[0, 1] + b3_ref[0, 1]
        else:
            logit0 = logit0 + h2j * w3_ref[j, 0]
            logit1 = logit1 + h2j * w3_ref[j, 1]

    # Dropout (p_keep = 0.7): identity at inference time.

    # Softmax(dim=1) specialized for 2 classes: sigmoid of the logit difference,
    # numerically stable via exp(-|z|). exp + approx reciprocal ride the EUP slot.
    z = logit1 - logit0
    e = jnp.exp(-jnp.abs(z))
    denom = 1.0 + e                      # in (1, 2] -> no overflow
    r = pl.reciprocal(denom, approx=True)
    r = r * (2.0 - denom * r)            # one Newton step -> ~full f32 precision
    p1 = jnp.where(z >= 0.0, r, e * r)
    p0 = jnp.where(z >= 0.0, e * r, r)   # symmetric form: p0 + p1 == (1 + e) * r exactly
    o_ref[0] = p0
    o_ref[1] = p1


def _round_up(n, m):
    return pl.cdiv(n, m) * m


def my_custom_module_forward(x, params, *, block_rows=1024):
    """x: (B, 3) f32.  params: (w1,b1,w2,b2,w3,b3) with w as (in, out), b as (1, out).

    block_rows: sublane rows per grid step; tile = block_rows * 128 batch elements
    (default 1024 -> 131072 elements ~= 13 MiB VMEM incl. double buffering + temps).
    """
    w1, b1, w2, b2, w3, b3 = params
    B = x.shape[0]

    nb = pl.cdiv(B, LANES)                              # number of 128-lane rows needed
    r = _round_up(min(block_rows, _round_up(nb, SUBLANES)), SUBLANES)
    nb_pad = _round_up(nb, r)
    b_pad = nb_pad * LANES

    # Single pad + transpose + reshape pass (fused by XLA). Tail rows are zeros (valid
    # math, discarded after the kernel). Batch index b -> (b // 128, b % 128).
    xt = jnp.pad(x, ((0, b_pad - B), (0, 0))).T.reshape(N_INPUTS, nb_pad, LANES)

    smem = pltpu.MemorySpace.SMEM
    grid = (nb_pad // r,)

    flops = 2 * B * (N_INPUTS * N_HIDDEN + N_HIDDEN * N_HIDDEN2 + N_HIDDEN2 * N_OUTPUT)
    bytes_accessed = 4 * (
        b_pad * (N_INPUTS + N_OUTPUT)
        + N_INPUTS * N_HIDDEN + N_HIDDEN
        + N_HIDDEN * N_HIDDEN2 + N_HIDDEN2
        + N_HIDDEN2 * N_OUTPUT + N_OUTPUT
    )

    out3 = pl.pallas_call(
        mlp_softmax_kernel,
        out_shape=jax.ShapeDtypeStruct((N_OUTPUT, nb_pad, LANES), jnp.float32),
        grid=grid,
        in_specs=[
            pl.BlockSpec((N_INPUTS, r, LANES), lambda i: (0, i, 0)),
            pl.BlockSpec(w1.shape, lambda i: (0, 0), memory_space=smem),
            pl.BlockSpec(b1.shape, lambda i: (0, 0), memory_space=smem),
            pl.BlockSpec(w2.shape, lambda i: (0, 0), memory_space=smem),
            pl.BlockSpec(b2.shape, lambda i: (0, 0), memory_space=smem),
            pl.BlockSpec(w3.shape, lambda i: (0, 0), memory_space=smem),
            pl.BlockSpec(b3.shape, lambda i: (0, 0), memory_space=smem),
        ],
        out_specs=pl.BlockSpec((N_OUTPUT, r, LANES), lambda i: (0, i, 0)),
        compiler_params=pltpu.CompilerParams(
            dimension_semantics=("parallel",),          # shards batch tiles across TCs on v7x
            vmem_limit_bytes=32 * 1024 * 1024,          # safe on v5e/v6e/v7x, >> actual usage
        ),
        cost_estimate=pl.CostEstimate(
            flops=flops, transcendentals=2 * B, bytes_accessed=bytes_accessed
        ),
    )(xt, w1, b1, w2, b2, w3, b3)

    # Back to (B, 2). (Consumer here wants row-major (B, 2); if a downstream op could
    # accept (2, B) this final transpose could be dropped.)
    return out3.reshape(N_OUTPUT, b_pad)[:, :B].T


def init_linear(key, fan_in, fan_out):
    # Mimic PyTorch nn.Linear default init: U(-1/sqrt(fan_in), 1/sqrt(fan_in)).
    kw, kb = jax.random.split(key)
    bound = 1.0 / math.sqrt(fan_in)
    w = jax.random.uniform(kw, (fan_in, fan_out), jnp.float32, -bound, bound)
    b = jax.random.uniform(kb, (1, fan_out), jnp.float32, -bound, bound)
    return w, b


def reference_forward(x, params):
    w1, b1, w2, b2, w3, b3 = params
    h1 = jnp.maximum(x @ w1 + b1, 0.0)
    h2 = jnp.maximum(h1 @ w2 + b2, 0.0)
    logits = h2 @ w3 + b3
    return jax.nn.softmax(logits, axis=1)


if __name__ == "__main__":
    key = jax.random.PRNGKey(0)
    kx, k1, k2, k3 = jax.random.split(key, 4)

    batch = 300  # deliberately not a multiple of 128 to exercise tail padding
    x = jax.random.normal(kx, (batch, N_INPUTS), jnp.float32)

    w1, b1 = init_linear(k1, N_INPUTS, N_HIDDEN)
    w2, b2 = init_linear(k2, N_HIDDEN, N_HIDDEN2)
    w3, b3 = init_linear(k3, N_HIDDEN2, N_OUTPUT)
    params = (w1, b1, w2, b2, w3, b3)

    out = my_custom_module_forward(x, params)
    out = jax.block_until_ready(out)

    ref = reference_forward(x, params)
    assert out.shape == (batch, N_OUTPUT)
    assert jnp.allclose(out, ref, atol=1e-5, rtol=1e-5), "mismatch vs reference"
    assert jnp.allclose(jnp.sum(out, axis=1), 1.0, atol=1e-5), "softmax rows must sum to 1"

    print("KERNEL_OK")
</pallas_src>

<mosaic_0001>
module attributes {stable_mosaic.version = 11 : i64} {
  func.func @mlp_softmax_kernel(%arg0: i32, %arg1: memref<3x8x128xf32, #tpu.memory_space<vmem>>, %arg2: memref<3x4xf32, #tpu.memory_space<smem>>, %arg3: memref<1x4xf32, #tpu.memory_space<smem>>, %arg4: memref<4x8xf32, #tpu.memory_space<smem>>, %arg5: memref<1x8xf32, #tpu.memory_space<smem>>, %arg6: memref<8x2xf32, #tpu.memory_space<smem>>, %arg7: memref<1x2xf32, #tpu.memory_space<smem>>, %arg8: memref<2x8x128xf32, #tpu.memory_space<vmem>>) attributes {dimension_semantics = [#tpu.dimension_semantics<parallel>], iteration_bounds = array<i64: 1>, scalar_prefetch = 0 : i64, scratch_operands = 0 : i64, tpu.core_type = #tpu.core_type<tc>, window_params = [{transform_indices = @transform_0, window_bounds = array<i64: 3, 8, 128>}, {transform_indices = @transform_1, window_bounds = array<i64: 3, 4>}, {transform_indices = @transform_2, window_bounds = array<i64: 1, 4>}, {transform_indices = @transform_3, window_bounds = array<i64: 4, 8>}, {transform_indices = @transform_4, window_bounds = array<i64: 1, 8>}, {transform_indices = @transform_5, window_bounds = array<i64: 8, 2>}, {transform_indices = @transform_6, window_bounds = array<i64: 1, 2>}, {transform_indices = @transform_7, window_bounds = array<i64: 2, 8, 128>}]} {
    %c0 = arith.constant 0 : index
    %c0_0 = arith.constant 0 : index
    %c0_1 = arith.constant 0 : index
    %0 = vector.load %arg1[%c0, %c0_0, %c0_1] : memref<3x8x128xf32, #tpu.memory_space<vmem>>, vector<1x8x128xf32>
    %1 = vector.shape_cast %0 : vector<1x8x128xf32> to vector<8x128xf32>
    %c1 = arith.constant 1 : index
    %c0_2 = arith.constant 0 : index
    %c0_3 = arith.constant 0 : index
    %2 = vector.load %arg1[%c1, %c0_2, %c0_3] : memref<3x8x128xf32, #tpu.memory_space<vmem>>, vector<1x8x128xf32>
    %3 = vector.shape_cast %2 : vector<1x8x128xf32> to vector<8x128xf32>
    %c2 = arith.constant 2 : index
    %c0_4 = arith.constant 0 : index
    %c0_5 = arith.constant 0 : index
    %4 = vector.load %arg1[%c2, %c0_4, %c0_5] : memref<3x8x128xf32, #tpu.memory_space<vmem>>, vector<1x8x128xf32>
    %5 = vector.shape_cast %4 : vector<1x8x128xf32> to vector<8x128xf32>
    %c0_6 = arith.constant 0 : index
    %c0_7 = arith.constant 0 : index
    %6 = memref.load %arg2[%c0_6, %c0_7] : memref<3x4xf32, #tpu.memory_space<smem>>
    %7 = vector.broadcast %6 : f32 to vector<8x128xf32>
    %8 = arith.mulf %1, %7 : vector<8x128xf32>
    %c0_8 = arith.constant 0 : index
    %c0_9 = arith.constant 0 : index
    %9 = memref.load %arg3[%c0_8, %c0_9] : memref<1x4xf32, #tpu.memory_space<smem>>
    %10 = vector.broadcast %9 : f32 to vector<8x128xf32>
    %11 = arith.addf %8, %10 : vector<8x128xf32>
    %c1_10 = arith.constant 1 : index
    %c0_11 = arith.constant 0 : index
    %12 = memref.load %arg2[%c1_10, %c0_11] : memref<3x4xf32, #tpu.memory_space<smem>>
    %13 = vector.broadcast %12 : f32 to vector<8x128xf32>
    %14 = arith.mulf %3, %13 : vector<8x128xf32>
    %15 = arith.addf %11, %14 : vector<8x128xf32>
    %c2_12 = arith.constant 2 : index
    %c0_13 = arith.constant 0 : index
    %16 = memref.load %arg2[%c2_12, %c0_13] : memref<3x4xf32, #tpu.memory_space<smem>>
    %17 = vector.broadcast %16 : f32 to vector<8x128xf32>
    %18 = arith.mulf %5, %17 : vector<8x128xf32>
    %19 = arith.addf %15, %18 : vector<8x128xf32>
    %cst = arith.constant 0.000000e+00 : f32
    %20 = vector.broadcast %cst : f32 to vector<8x128xf32>
    %21 = arith.maximumf %19, %20 : vector<8x128xf32>
    %c0_14 = arith.constant 0 : index
    %c1_15 = arith.constant 1 : index
    %22 = memref.load %arg2[%c0_14, %c1_15] : memref<3x4xf32, #tpu.memory_space<smem>>
    %23 = vector.broadcast %22 : f32 to vector<8x128xf32>
    %24 = arith.mulf %1, %23 : vector<8x128xf32>
    %c0_16 = arith.constant 0 : index
    %c1_17 = arith.constant 1 : index
    %25 = memref.load %arg3[%c0_16, %c1_17] : memref<1x4xf32, #tpu.memory_space<smem>>
    %26 = vector.broadcast %25 : f32 to vector<8x128xf32>
    %27 = arith.addf %24, %26 : vector<8x128xf32>
    %c1_18 = arith.constant 1 : index
    %c1_19 = arith.constant 1 : index
    %28 = memref.load %arg2[%c1_18, %c1_19] : memref<3x4xf32, #tpu.memory_space<smem>>
    %29 = vector.broadcast %28 : f32 to vector<8x128xf32>
    %30 = arith.mulf %3, %29 : vector<8x128xf32>
    %31 = arith.addf %27, %30 : vector<8x128xf32>
    %c2_20 = arith.constant 2 : index
    %c1_21 = arith.constant 1 : index
    %32 = memref.load %arg2[%c2_20, %c1_21] : memref<3x4xf32, #tpu.memory_space<smem>>
    %33 = vector.broadcast %32 : f32 to vector<8x128xf32>
    %34 = arith.mulf %5, %33 : vector<8x128xf32>
    %35 = arith.addf %31, %34 : vector<8x128xf32>
    %cst_22 = arith.constant 0.000000e+00 : f32
    %36 = vector.broadcast %cst_22 : f32 to vector<8x128xf32>
    %37 = arith.maximumf %35, %36 : vector<8x128xf32>
    %c0_23 = arith.constant 0 : index
    %c2_24 = arith.constant 2 : index
    %38 = memref.load %arg2[%c0_23, %c2_24] : memref<3x4xf32, #tpu.memory_space<smem>>
    %39 = vector.broadcast %38 : f32 to vector<8x128xf32>
    %40 = arith.mulf %1, %39 : vector<8x128xf32>
    %c0_25 = arith.constant 0 : index
    %c2_26 = arith.constant 2 : index
    %41 = memref.load %arg3[%c0_25, %c2_26] : memref<1x4xf32, #tpu.memory_space<smem>>
    %42 = vector.broadcast %41 : f32 to vector<8x128xf32>
    %43 = arith.addf %40, %42 : vector<8x128xf32>
    %c1_27 = arith.constant 1 : index
    %c2_28 = arith.constant 2 : index
    %44 = memref.load %arg2[%c1_27, %c2_28] : memref<3x4xf32, #tpu.memory_space<smem>>
    %45 = vector.broadcast %44 : f32 to vector<8x128xf32>
    %46 = arith.mulf %3, %45 : vector<8x128xf32>
    %47 = arith.addf %43, %46 : vector<8x128xf32>
    %c2_29 = arith.constant 2 : index
    %c2_30 = arith.constant 2 : index
    %48 = memref.load %arg2[%c2_29, %c2_30] : memref<3x4xf32, #tpu.memory_space<smem>>
    %49 = vector.broadcast %48 : f32 to vector<8x128xf32>
    %50 = arith.mulf %5, %49 : vector<8x128xf32>
    %51 = arith.addf %47, %50 : vector<8x128xf32>
    %cst_31 = arith.constant 0.000000e+00 : f32
    %52 = vector.broadcast %cst_31 : f32 to vector<8x128xf32>
    %53 = arith.maximumf %51, %52 : vector<8x128xf32>
    %c0_32 = arith.constant 0 : index
    %c3 = arith.constant 3 : index
    %54 = memref.load %arg2[%c0_32, %c3] : memref<3x4xf32, #tpu.memory_space<smem>>
    %55 = vector.broadcast %54 : f32 to vector<8x128xf32>
    %56 = arith.mulf %1, %55 : vector<8x128xf32>
    %c0_33 = arith.constant 0 : index
    %c3_34 = arith.constant 3 : index
    %57 = memref.load %arg3[%c0_33, %c3_34] : memref<1x4xf32, #tpu.memory_space<smem>>
    %58 = vector.broadcast %57 : f32 to vector<8x128xf32>
    %59 = arith.addf %56, %58 : vector<8x128xf32>
    %c1_35 = arith.constant 1 : index
    %c3_36 = arith.constant 3 : index
    %60 = memref.load %arg2[%c1_35, %c3_36] : memref<3x4xf32, #tpu.memory_space<smem>>
    %61 = vector.broadcast %60 : f32 to vector<8x128xf32>
    %62 = arith.mulf %3, %61 : vector<8x128xf32>
    %63 = arith.addf %59, %62 : vector<8x128xf32>
    %c2_37 = arith.constant 2 : index
    %c3_38 = arith.constant 3 : index
    %64 = memref.load %arg2[%c2_37, %c3_38] : memref<3x4xf32, #tpu.memory_space<smem>>
    %65 = vector.broadcast %64 : f32 to vector<8x128xf32>
    %66 = arith.mulf %5, %65 : vector<8x128xf32>
    %67 = arith.addf %63, %66 : vector<8x128xf32>
    %cst_39 = arith.constant 0.000000e+00 : f32
    %68 = vector.broadcast %cst_39 : f32 to vector<8x128xf32>
    %69 = arith.maximumf %67, %68 : vector<8x128xf32>
    %c0_40 = arith.constant 0 : index
    %c0_41 = arith.constant 0 : index
    %70 = memref.load %arg4[%c0_40, %c0_41] : memref<4x8xf32, #tpu.memory_space<smem>>
    %71 = vector.broadcast %70 : f32 to vector<8x128xf32>
    %72 = arith.mulf %21, %71 : vector<8x128xf32>
    %c0_42 = arith.constant 0 : index
    %c0_43 = arith.constant 0 : index
    %73 = memref.load %arg5[%c0_42, %c0_43] : memref<1x8xf32, #tpu.memory_space<smem>>
    %74 = vector.broadcast %73 : f32 to vector<8x128xf32>
    %75 = arith.addf %72, %74 : vector<8x128xf32>
    %c1_44 = arith.constant 1 : index
    %c0_45 = arith.constant 0 : index
    %76 = memref.load %arg4[%c1_44, %c0_45] : memref<4x8xf32, #tpu.memory_space<smem>>
    %77 = vector.broadcast %76 : f32 to vector<8x128xf32>
    %78 = arith.mulf %37, %77 : vector<8x128xf32>
    %79 = arith.addf %75, %78 : vector<8x128xf32>
    %c2_46 = arith.constant 2 : index
    %c0_47 = arith.constant 0 : index
    %80 = memref.load %arg4[%c2_46, %c0_47] : memref<4x8xf32, #tpu.memory_space<smem>>
    %81 = vector.broadcast %80 : f32 to vector<8x128xf32>
    %82 = arith.mulf %53, %81 : vector<8x128xf32>
    %83 = arith.addf %79, %82 : vector<8x128xf32>
    %c3_48 = arith.constant 3 : index
    %c0_49 = arith.constant 0 : index
    %84 = memref.load %arg4[%c3_48, %c0_49] : memref<4x8xf32, #tpu.memory_space<smem>>
    %85 = vector.broadcast %84 : f32 to vector<8x128xf32>
    %86 = arith.mulf %69, %85 : vector<8x128xf32>
    %87 = arith.addf %83, %86 : vector<8x128xf32>
    %cst_50 = arith.constant 0.000000e+00 : f32
    %88 = vector.broadcast %cst_50 : f32 to vector<8x128xf32>
    %89 = arith.maximumf %87, %88 : vector<8x128xf32>
    %c0_51 = arith.constant 0 : index
    %c0_52 = arith.constant 0 : index
    %90 = memref.load %arg6[%c0_51, %c0_52] : memref<8x2xf32, #tpu.memory_space<smem>>
    %91 = vector.broadcast %90 : f32 to vector<8x128xf32>
    %92 = arith.mulf %89, %91 : vector<8x128xf32>
    %c0_53 = arith.constant 0 : index
    %c0_54 = arith.constant 0 : index
    %93 = memref.load %arg7[%c0_53, %c0_54] : memref<1x2xf32, #tpu.memory_space<smem>>
    %94 = vector.broadcast %93 : f32 to vector<8x128xf32>
    %95 = arith.addf %92, %94 : vector<8x128xf32>
    %c0_55 = arith.constant 0 : index
    %c1_56 = arith.constant 1 : index
    %96 = memref.load %arg6[%c0_55, %c1_56] : memref<8x2xf32, #tpu.memory_space<smem>>
    %97 = vector.broadcast %96 : f32 to vector<8x128xf32>
    %98 = arith.mulf %89, %97 : vector<8x128xf32>
    %c0_57 = arith.constant 0 : index
    %c1_58 = arith.constant 1 : index
    %99 = memref.load %arg7[%c0_57, %c1_58] : memref<1x2xf32, #tpu.memory_space<smem>>
    %100 = vector.broadcast %99 : f32 to vector<8x128xf32>
    %101 = arith.addf %98, %100 : vector<8x128xf32>
    %c0_59 = arith.constant 0 : index
    %c1_60 = arith.constant 1 : index
    %102 = memref.load %arg4[%c0_59, %c1_60] : memref<4x8xf32, #tpu.memory_space<smem>>
    %103 = vector.broadcast %102 : f32 to vector<8x128xf32>
    %104 = arith.mulf %21, %103 : vector<8x128xf32>
    %c0_61 = arith.constant 0 : index
    %c1_62 = arith.constant 1 : index
    %105 = memref.load %arg5[%c0_61, %c1_62] : memref<1x8xf32, #tpu.memory_space<smem>>
    %106 = vector.broadcast %105 : f32 to vector<8x128xf32>
    %107 = arith.addf %104, %106 : vector<8x128xf32>
    %c1_63 = arith.constant 1 : index
    %c1_64 = arith.constant 1 : index
    %108 = memref.load %arg4[%c1_63, %c1_64] : memref<4x8xf32, #tpu.memory_space<smem>>
    %109 = vector.broadcast %108 : f32 to vector<8x128xf32>
    %110 = arith.mulf %37, %109 : vector<8x128xf32>
    %111 = arith.addf %107, %110 : vector<8x128xf32>
    %c2_65 = arith.constant 2 : index
    %c1_66 = arith.constant 1 : index
    %112 = memref.load %arg4[%c2_65, %c1_66] : memref<4x8xf32, #tpu.memory_space<smem>>
    %113 = vector.broadcast %112 : f32 to vector<8x128xf32>
    %114 = arith.mulf %53, %113 : vector<8x128xf32>
    %115 = arith.addf %111, %114 : vector<8x128xf32>
    %c3_67 = arith.constant 3 : index
    %c1_68 = arith.constant 1 : index
    %116 = memref.load %arg4[%c3_67, %c1_68] : memref<4x8xf32, #tpu.memory_space<smem>>
    %117 = vector.broadcast %116 : f32 to vector<8x128xf32>
    %118 = arith.mulf %69, %117 : vector<8x128xf32>
    %119 = arith.addf %115, %118 : vector<8x128xf32>
    %cst_69 = arith.constant 0.000000e+00 : f32
    %120 = vector.broadcast %cst_69 : f32 to vector<8x128xf32>
    %121 = arith.maximumf %119, %120 : vector<8x128xf32>
    %c1_70 = arith.constant 1 : index
    %c0_71 = arith.constant 0 : index
    %122 = memref.load %arg6[%c1_70, %c0_71] : memref<8x2xf32, #tpu.memory_space<smem>>
    %123 = vector.broadcast %122 : f32 to vector<8x128xf32>
    %124 = arith.mulf %121, %123 : vector<8x128xf32>
    %125 = arith.addf %95, %124 : vector<8x128xf32>
    %c1_72 = arith.constant 1 : index
    %c1_73 = arith.constant 1 : index
    %126 = memref.load %arg6[%c1_72, %c1_73] : memref<8x2xf32, #tpu.memory_space<smem>>
    %127 = vector.broadcast %126 : f32 to vector<8x128xf32>
    %128 = arith.mulf %121, %127 : vector<8x128xf32>
    %129 = arith.addf %101, %128 : vector<8x128xf32>
    %c0_74 = arith.constant 0 : index
    %c2_75 = arith.constant 2 : index
    %130 = memref.load %arg4[%c0_74, %c2_75] : memref<4x8xf32, #tpu.memory_space<smem>>
    %131 = vector.broadcast %130 : f32 to vector<8x128xf32>
    %132 = arith.mulf %21, %131 : vector<8x128xf32>
    %c0_76 = arith.constant 0 : index
    %c2_77 = arith.constant 2 : index
    %133 = memref.load %arg5[%c0_76, %c2_77] : memref<1x8xf32, #tpu.memory_space<smem>>
    %134 = vector.broadcast %133 : f32 to vector<8x128xf32>
    %135 = arith.addf %132, %134 : vector<8x128xf32>
    %c1_78 = arith.constant 1 : index
    %c2_79 = arith.constant 2 : index
    %136 = memref.load %arg4[%c1_78, %c2_79] : memref<4x8xf32, #tpu.memory_space<smem>>
    %137 = vector.broadcast %136 : f32 to vector<8x128xf32>
    %138 = arith.mulf %37, %137 : vector<8x128xf32>
    %139 = arith.addf %135, %138 : vector<8x128xf32>
    %c2_80 = arith.constant 2 : index
    %c2_81 = arith.constant 2 : index
    %140 = memref.load %arg4[%c2_80, %c2_81] : memref<4x8xf32, #tpu.memory_space<smem>>
    %141 = vector.broadcast %140 : f32 to vector<8x128xf32>
    %142 = arith.mulf %53, %141 : vector<8x128xf32>
    %143 = arith.addf %139, %142 : vector<8x128xf32>
    %c3_82 = arith.constant 3 : index
    %c2_83 = arith.constant 2 : index
    %144 = memref.load %arg4[%c3_82, %c2_83] : memref<4x8xf32, #tpu.memory_space<smem>>
    %145 = vector.broadcast %144 : f32 to vector<8x128xf32>
    %146 = arith.mulf %69, %145 : vector<8x128xf32>
    %147 = arith.addf %143, %146 : vector<8x128xf32>
    %cst_84 = arith.constant 0.000000e+00 : f32
    %148 = vector.broadcast %cst_84 : f32 to vector<8x128xf32>
    %149 = arith.maximumf %147, %148 : vector<8x128xf32>
    %c2_85 = arith.constant 2 : index
    %c0_86 = arith.constant 0 : index
    %150 = memref.load %arg6[%c2_85, %c0_86] : memref<8x2xf32, #tpu.memory_space<smem>>
    %151 = vector.broadcast %150 : f32 to vector<8x128xf32>
    %152 = arith.mulf %149, %151 : vector<8x128xf32>
    %153 = arith.addf %125, %152 : vector<8x128xf32>
    %c2_87 = arith.constant 2 : index
    %c1_88 = arith.constant 1 : index
    %154 = memref.load %arg6[%c2_87, %c1_88] : memref<8x2xf32, #tpu.memory_space<smem>>
    %155 = vector.broadcast %154 : f32 to vector<8x128xf32>
    %156 = arith.mulf %149, %155 : vector<8x128xf32>
    %157 = arith.addf %129, %156 : vector<8x128xf32>
    %c0_89 = arith.constant 0 : index
    %c3_90 = arith.constant 3 : index
    %158 = memref.load %arg4[%c0_89, %c3_90] : memref<4x8xf32, #tpu.memory_space<smem>>
    %159 = vector.broadcast %158 : f32 to vector<8x128xf32>
    %160 = arith.mulf %21, %159 : vector<8x128xf32>
    %c0_91 = arith.constant 0 : index
    %c3_92 = arith.constant 3 : index
    %161 = memref.load %arg5[%c0_91, %c3_92] : memref<1x8xf32, #tpu.memory_space<smem>>
    %162 = vector.broadcast %161 : f32 to vector<8x128xf32>
    %163 = arith.addf %160, %162 : vector<8x128xf32>
    %c1_93 = arith.constant 1 : index
    %c3_94 = arith.constant 3 : index
    %164 = memref.load %arg4[%c1_93, %c3_94] : memref<4x8xf32, #tpu.memory_space<smem>>
    %165 = vector.broadcast %164 : f32 to vector<8x128xf32>
    %166 = arith.mulf %37, %165 : vector<8x128xf32>
    %167 = arith.addf %163, %166 : vector<8x128xf32>
    %c2_95 = arith.constant 2 : index
    %c3_96 = arith.constant 3 : index
    %168 = memref.load %arg4[%c2_95, %c3_96] : memref<4x8xf32, #tpu.memory_space<smem>>
    %169 = vector.broadcast %168 : f32 to vector<8x128xf32>
    %170 = arith.mulf %53, %169 : vector<8x128xf32>
    %171 = arith.addf %167, %170 : vector<8x128xf32>
    %c3_97 = arith.constant 3 : index
    %c3_98 = arith.constant 3 : index
    %172 = memref.load %arg4[%c3_97, %c3_98] : memref<4x8xf32, #tpu.memory_space<smem>>
    %173 = vector.broadcast %172 : f32 to vector<8x128xf32>
    %174 = arith.mulf %69, %173 : vector<8x128xf32>
    %175 = arith.addf %171, %174 : vector<8x128xf32>
    %cst_99 = arith.constant 0.000000e+00 : f32
    %176 = vector.broadcast %cst_99 : f32 to vector<8x128xf32>
    %177 = arith.maximumf %175, %176 : vector<8x128xf32>
    %c3_100 = arith.constant 3 : index
    %c0_101 = arith.constant 0 : index
    %178 = memref.load %arg6[%c3_100, %c0_101] : memref<8x2xf32, #tpu.memory_space<smem>>
    %179 = vector.broadcast %178 : f32 to vector<8x128xf32>
    %180 = arith.mulf %177, %179 : vector<8x128xf32>
    %181 = arith.addf %153, %180 : vector<8x128xf32>
    %c3_102 = arith.constant 3 : index
    %c1_103 = arith.constant 1 : index
    %182 = memref.load %arg6[%c3_102, %c1_103] : memref<8x2xf32, #tpu.memory_space<smem>>
    %183 = vector.broadcast %182 : f32 to vector<8x128xf32>
    %184 = arith.mulf %177, %183 : vector<8x128xf32>
    %185 = arith.addf %157, %184 : vector<8x128xf32>
    %c0_104 = arith.constant 0 : index
    %c4 = arith.constant 4 : index
    %186 = memref.load %arg4[%c0_104, %c4] : memref<4x8xf32, #tpu.memory_space<smem>>
    %187 = vector.broadcast %186 : f32 to vector<8x128xf32>
    %188 = arith.mulf %21, %187 : vector<8x128xf32>
    %c0_105 = arith.constant 0 : index
    %c4_106 = arith.constant 4 : index
    %189 = memref.load %arg5[%c0_105, %c4_106] : memref<1x8xf32, #tpu.memory_space<smem>>
    %190 = vector.broadcast %189 : f32 to vector<8x128xf32>
    %191 = arith.addf %188, %190 : vector<8x128xf32>
    %c1_107 = arith.constant 1 : index
    %c4_108 = arith.constant 4 : index
    %192 = memref.load %arg4[%c1_107, %c4_108] : memref<4x8xf32, #tpu.memory_space<smem>>
    %193 = vector.broadcast %192 : f32 to vector<8x128xf32>
    %194 = arith.mulf %37, %193 : vector<8x128xf32>
    %195 = arith.addf %191, %194 : vector<8x128xf32>
    %c2_109 = arith.constant 2 : index
    %c4_110 = arith.constant 4 : index
    %196 = memref.load %arg4[%c2_109, %c4_110] : memref<4x8xf32, #tpu.memory_space<smem>>
    %197 = vector.broadcast %196 : f32 to vector<8x128xf32>
    %198 = arith.mulf %53, %197 : vector<8x128xf32>
    %199 = arith.addf %195, %198 : vector<8x128xf32>
    %c3_111 = arith.constant 3 : index
    %c4_112 = arith.constant 4 : index
    %200 = memref.load %arg4[%c3_111, %c4_112] : memref<4x8xf32, #tpu.memory_space<smem>>
    %201 = vector.broadcast %200 : f32 to vector<8x128xf32>
    %202 = arith.mulf %69, %201 : vector<8x128xf32>
    %203 = arith.addf %199, %202 : vector<8x128xf32>
    %cst_113 = arith.constant 0.000000e+00 : f32
    %204 = vector.broadcast %cst_113 : f32 to vector<8x128xf32>
    %205 = arith.maximumf %203, %204 : vector<8x128xf32>
    %c4_114 = arith.constant 4 : index
    %c0_115 = arith.constant 0 : index
    %206 = memref.load %arg6[%c4_114, %c0_115] : memref<8x2xf32, #tpu.memory_space<smem>>
    %207 = vector.broadcast %206 : f32 to vector<8x128xf32>
    %208 = arith.mulf %205, %207 : vector<8x128xf32>
    %209 = arith.addf %181, %208 : vector<8x128xf32>
    %c4_116 = arith.constant 4 : index
    %c1_117 = arith.constant 1 : index
    %210 = memref.load %arg6[%c4_116, %c1_117] : memref<8x2xf32, #tpu.memory_space<smem>>
    %211 = vector.broadcast %210 : f32 to vector<8x128xf32>
    %212 = arith.mulf %205, %211 : vector<8x128xf32>
    %213 = arith.addf %185, %212 : vector<8x128xf32>
    %c0_118 = arith.constant 0 : index
    %c5 = arith.constant 5 : index
    %214 = memref.load %arg4[%c0_118, %c5] : memref<4x8xf32, #tpu.memory_space<smem>>
    %215 = vector.broadcast %214 : f32 to vector<8x128xf32>
    %216 = arith.mulf %21, %215 : vector<8x128xf32>
    %c0_119 = arith.constant 0 : index
    %c5_120 = arith.constant 5 : index
    %217 = memref.load %arg5[%c0_119, %c5_120] : memref<1x8xf32, #tpu.memory_space<smem>>
    %218 = vector.broadcast %217 : f32 to vector<8x128xf32>
    %219 = arith.addf %216, %218 : vector<8x128xf32>
    %c1_121 = arith.constant 1 : index
    %c5_122 = arith.constant 5 : index
    %220 = memref.load %arg4[%c1_121, %c5_122] : memref<4x8xf32, #tpu.memory_space<smem>>
    %221 = vector.broadcast %220 : f32 to vector<8x128xf32>
    %222 = arith.mulf %37, %221 : vector<8x128xf32>
    %223 = arith.addf %219, %222 : vector<8x128xf32>
    %c2_123 = arith.constant 2 : index
    %c5_124 = arith.constant 5 : index
    %224 = memref.load %arg4[%c2_123, %c5_124] : memref<4x8xf32, #tpu.memory_space<smem>>
    %225 = vector.broadcast %224 : f32 to vector<8x128xf32>
    %226 = arith.mulf %53, %225 : vector<8x128xf32>
    %227 = arith.addf %223, %226 : vector<8x128xf32>
    %c3_125 = arith.constant 3 : index
    %c5_126 = arith.constant 5 : index
    %228 = memref.load %arg4[%c3_125, %c5_126] : memref<4x8xf32, #tpu.memory_space<smem>>
    %229 = vector.broadcast %228 : f32 to vector<8x128xf32>
    %230 = arith.mulf %69, %229 : vector<8x128xf32>
    %231 = arith.addf %227, %230 : vector<8x128xf32>
    %cst_127 = arith.constant 0.000000e+00 : f32
    %232 = vector.broadcast %cst_127 : f32 to vector<8x128xf32>
    %233 = arith.maximumf %231, %232 : vector<8x128xf32>
    %c5_128 = arith.constant 5 : index
    %c0_129 = arith.constant 0 : index
    %234 = memref.load %arg6[%c5_128, %c0_129] : memref<8x2xf32, #tpu.memory_space<smem>>
    %235 = vector.broadcast %234 : f32 to vector<8x128xf32>
    %236 = arith.mulf %233, %235 : vector<8x128xf32>
    %237 = arith.addf %209, %236 : vector<8x128xf32>
    %c5_130 = arith.constant 5 : index
    %c1_131 = arith.constant 1 : index
    %238 = memref.load %arg6[%c5_130, %c1_131] : memref<8x2xf32, #tpu.memory_space<smem>>
    %239 = vector.broadcast %238 : f32 to vector<8x128xf32>
    %240 = arith.mulf %233, %239 : vector<8x128xf32>
    %241 = arith.addf %213, %240 : vector<8x128xf32>
    %c0_132 = arith.constant 0 : index
    %c6 = arith.constant 6 : index
    %242 = memref.load %arg4[%c0_132, %c6] : memref<4x8xf32, #tpu.memory_space<smem>>
    %243 = vector.broadcast %242 : f32 to vector<8x128xf32>
    %244 = arith.mulf %21, %243 : vector<8x128xf32>
    %c0_133 = arith.constant 0 : index
    %c6_134 = arith.constant 6 : index
    %245 = memref.load %arg5[%c0_133, %c6_134] : memref<1x8xf32, #tpu.memory_space<smem>>
    %246 = vector.broadcast %245 : f32 to vector<8x128xf32>
    %247 = arith.addf %244, %246 : vector<8x128xf32>
    %c1_135 = arith.constant 1 : index
    %c6_136 = arith.constant 6 : index
    %248 = memref.load %arg4[%c1_135, %c6_136] : memref<4x8xf32, #tpu.memory_space<smem>>
    %249 = vector.broadcast %248 : f32 to vector<8x128xf32>
    %250 = arith.mulf %37, %249 : vector<8x128xf32>
    %251 = arith.addf %247, %250 : vector<8x128xf32>
    %c2_137 = arith.constant 2 : index
    %c6_138 = arith.constant 6 : index
    %252 = memref.load %arg4[%c2_137, %c6_138] : memref<4x8xf32, #tpu.memory_space<smem>>
    %253 = vector.broadcast %252 : f32 to vector<8x128xf32>
    %254 = arith.mulf %53, %253 : vector<8x128xf32>
    %255 = arith.addf %251, %254 : vector<8x128xf32>
    %c3_139 = arith.constant 3 : index
    %c6_140 = arith.constant 6 : index
    %256 = memref.load %arg4[%c3_139, %c6_140] : memref<4x8xf32, #tpu.memory_space<smem>>
    %257 = vector.broadcast %256 : f32 to vector<8x128xf32>
    %258 = arith.mulf %69, %257 : vector<8x128xf32>
    %259 = arith.addf %255, %258 : vector<8x128xf32>
    %cst_141 = arith.constant 0.000000e+00 : f32
    %260 = vector.broadcast %cst_141 : f32 to vector<8x128xf32>
    %261 = arith.maximumf %259, %260 : vector<8x128xf32>
    %c6_142 = arith.constant 6 : index
    %c0_143 = arith.constant 0 : index
    %262 = memref.load %arg6[%c6_142, %c0_143] : memref<8x2xf32, #tpu.memory_space<smem>>
    %263 = vector.broadcast %262 : f32 to vector<8x128xf32>
    %264 = arith.mulf %261, %263 : vector<8x128xf32>
    %265 = arith.addf %237, %264 : vector<8x128xf32>
    %c6_144 = arith.constant 6 : index
    %c1_145 = arith.constant 1 : index
    %266 = memref.load %arg6[%c6_144, %c1_145] : memref<8x2xf32, #tpu.memory_space<smem>>
    %267 = vector.broadcast %266 : f32 to vector<8x128xf32>
    %268 = arith.mulf %261, %267 : vector<8x128xf32>
    %269 = arith.addf %241, %268 : vector<8x128xf32>
    %c0_146 = arith.constant 0 : index
    %c7 = arith.constant 7 : index
    %270 = memref.load %arg4[%c0_146, %c7] : memref<4x8xf32, #tpu.memory_space<smem>>
    %271 = vector.broadcast %270 : f32 to vector<8x128xf32>
    %272 = arith.mulf %21, %271 : vector<8x128xf32>
    %c0_147 = arith.constant 0 : index
    %c7_148 = arith.constant 7 : index
    %273 = memref.load %arg5[%c0_147, %c7_148] : memref<1x8xf32, #tpu.memory_space<smem>>
    %274 = vector.broadcast %273 : f32 to vector<8x128xf32>
    %275 = arith.addf %272, %274 : vector<8x128xf32>
    %c1_149 = arith.constant 1 : index
    %c7_150 = arith.constant 7 : index
    %276 = memref.load %arg4[%c1_149, %c7_150] : memref<4x8xf32, #tpu.memory_space<smem>>
    %277 = vector.broadcast %276 : f32 to vector<8x128xf32>
    %278 = arith.mulf %37, %277 : vector<8x128xf32>
    %279 = arith.addf %275, %278 : vector<8x128xf32>
    %c2_151 = arith.constant 2 : index
    %c7_152 = arith.constant 7 : index
    %280 = memref.load %arg4[%c2_151, %c7_152] : memref<4x8xf32, #tpu.memory_space<smem>>
    %281 = vector.broadcast %280 : f32 to vector<8x128xf32>
    %282 = arith.mulf %53, %281 : vector<8x128xf32>
    %283 = arith.addf %279, %282 : vector<8x128xf32>
    %c3_153 = arith.constant 3 : index
    %c7_154 = arith.constant 7 : index
    %284 = memref.load %arg4[%c3_153, %c7_154] : memref<4x8xf32, #tpu.memory_space<smem>>
    %285 = vector.broadcast %284 : f32 to vector<8x128xf32>
    %286 = arith.mulf %69, %285 : vector<8x128xf32>
    %287 = arith.addf %283, %286 : vector<8x128xf32>
    %cst_155 = arith.constant 0.000000e+00 : f32
    %288 = vector.broadcast %cst_155 : f32 to vector<8x128xf32>
    %289 = arith.maximumf %287, %288 : vector<8x128xf32>
    %c7_156 = arith.constant 7 : index
    %c0_157 = arith.constant 0 : index
    %290 = memref.load %arg6[%c7_156, %c0_157] : memref<8x2xf32, #tpu.memory_space<smem>>
    %291 = vector.broadcast %290 : f32 to vector<8x128xf32>
    %292 = arith.mulf %289, %291 : vector<8x128xf32>
    %293 = arith.addf %265, %292 : vector<8x128xf32>
    %c7_158 = arith.constant 7 : index
    %c1_159 = arith.constant 1 : index
    %294 = memref.load %arg6[%c7_158, %c1_159] : memref<8x2xf32, #tpu.memory_space<smem>>
    %295 = vector.broadcast %294 : f32 to vector<8x128xf32>
    %296 = arith.mulf %289, %295 : vector<8x128xf32>
    %297 = arith.addf %269, %296 : vector<8x128xf32>
    %298 = arith.subf %297, %293 : vector<8x128xf32>
    %299 = math.absf %298 : vector<8x128xf32>
    %cst_160 = arith.constant 0.000000e+00 : f32
    %300 = vector.broadcast %cst_160 : f32 to vector<8x128xf32>
    %301 = arith.subf %300, %299 : vector<8x128xf32>
    %302 = math.exp %301 : vector<8x128xf32>
    %cst_161 = arith.constant 1.000000e+00 : f32
    %303 = vector.broadcast %cst_161 : f32 to vector<8x128xf32>
    %304 = arith.addf %303, %302 : vector<8x128xf32>
    %305 = tpu.reciprocal %304 {approx = true} : vector<8x128xf32> -> vector<8x128xf32>
    %306 = arith.mulf %304, %305 : vector<8x128xf32>
    %cst_162 = arith.constant 2.000000e+00 : f32
    %307 = vector.broadcast %cst_162 : f32 to vector<8x128xf32>
    %308 = arith.subf %307, %306 : vector<8x128xf32>
    %309 = arith.mulf %305, %308 : vector<8x128xf32>
    %cst_163 = arith.constant 0.000000e+00 : f32
    %310 = vector.broadcast %cst_163 : f32 to vector<8x128xf32>
    %311 = arith.cmpf oge, %298, %310 : vector<8x128xf32>
    %312 = arith.mulf %302, %309 : vector<8x128xf32>
    %313 = arith.select %311, %309, %312 : vector<8x128xi1>, vector<8x128xf32>
    %cst_164 = arith.constant 0.000000e+00 : f32
    %314 = vector.broadcast %cst_164 : f32 to vector<8x128xf32>
    %315 = arith.cmpf oge, %298, %314 : vector<8x128xf32>
    %316 = arith.mulf %302, %309 : vector<8x128xf32>
    %317 = arith.select %315, %316, %309 : vector<8x128xi1>, vector<8x128xf32>
    %c0_165 = arith.constant 0 : index
    %c0_166 = arith.constant 0 : index
    %c0_167 = arith.constant 0 : index
    %318 = vector.load %arg8[%c0_165, %c0_166, %c0_167] : memref<2x8x128xf32, #tpu.memory_space<vmem>>, vector<1x8x128xf32>
    %319 = vector.shape_cast %318 : vector<1x8x128xf32> to vector<8x128xf32>
    %320 = vector.shape_cast %317 : vector<8x128xf32> to vector<1x8x128xf32>
    tpu.vector_store %arg8[%c0_165, %c0_166, %c0_167], %320 {strides = array<i32>} : memref<2x8x128xf32, #tpu.memory_space<vmem>>, vector<1x8x128xf32>,
    %c1_168 = arith.constant 1 : index
    %c0_169 = arith.constant 0 : index
    %c0_170 = arith.constant 0 : index
    %321 = vector.load %arg8[%c1_168, %c0_169, %c0_170] : memref<2x8x128xf32, #tpu.memory_space<vmem>>, vector<1x8x128xf32>
    %322 = vector.shape_cast %321 : vector<1x8x128xf32> to vector<8x128xf32>
    %323 = vector.shape_cast %313 : vector<8x128xf32> to vector<1x8x128xf32>
    tpu.vector_store %arg8[%c1_168, %c0_169, %c0_170], %323 {strides = array<i32>} : memref<2x8x128xf32, #tpu.memory_space<vmem>>, vector<1x8x128xf32>,
    return
  }
  func.func @transform_0(%arg0: i32) -> (i32, i32, i32) {
    %c0_i32 = arith.constant 0 : i32
    %c0_i32_0 = arith.constant 0 : i32
    %c0_i32_1 = arith.constant 0 : i32
    return %c0_i32, %arg0, %c0_i32_0 : i32, i32, i32
  }
  func.func @transform_1(%arg0: i32) -> (i32, i32) {
    %c0_i32 = arith.constant 0 : i32
    %c0_i32_0 = arith.constant 0 : i32
    %c0_i32_1 = arith.constant 0 : i32
    return %c0_i32, %c0_i32_0 : i32, i32
  }
  func.func @transform_2(%arg0: i32) -> (i32, i32) {
    %c0_i32 = arith.constant 0 : i32
    %c0_i32_0 = arith.constant 0 : i32
    %c0_i32_1 = arith.constant 0 : i32
    return %c0_i32, %c0_i32_0 : i32, i32
  }
  func.func @transform_3(%arg0: i32) -> (i32, i32) {
    %c0_i32 = arith.constant 0 : i32
    %c0_i32_0 = arith.constant 0 : i32
    %c0_i32_1 = arith.constant 0 : i32
    return %c0_i32, %c0_i32_0 : i32, i32
  }
  func.func @transform_4(%arg0: i32) -> (i32, i32) {
    %c0_i32 = arith.constant 0 : i32
    %c0_i32_0 = arith.constant 0 : i32
    %c0_i32_1 = arith.constant 0 : i32
    return %c0_i32, %c0_i32_0 : i32, i32
  }
  func.func @transform_5(%arg0: i32) -> (i32, i32) {
    %c0_i32 = arith.constant 0 : i32
    %c0_i32_0 = arith.constant 0 : i32
    %c0_i32_1 = arith.constant 0 : i32
    return %c0_i32, %c0_i32_0 : i32, i32
  }
  func.func @transform_6(%arg0: i32) -> (i32, i32) {
    %c0_i32 = arith.constant 0 : i32
    %c0_i32_0 = arith.constant 0 : i32
    %c0_i32_1 = arith.constant 0 : i32
    return %c0_i32, %c0_i32_0 : i32, i32
  }
  func.func @transform_7(%arg0: i32) -> (i32, i32, i32) {
    %c0_i32 = arith.constant 0 : i32
    %c0_i32_0 = arith.constant 0 : i32
    %c0_i32_1 = arith.constant 0 : i32
    return %c0_i32, %arg0, %c0_i32_0 : i32, i32, i32
  }
}

</mosaic_0001>

<llo_original>
// kernel: tpu_custom_call.1
$region0: #{tpu_custom_call.1}
  #allocation0 [shape = 'u32[]', space=smem, size = 0x4, offset = 0x4, fixed_abs, tag = 'smem constant byte address 0x4 - core index']
  #allocation1 [shape = 'u32[144,128]{1,0:T(1,128)}', space=vmem, size = 0x12000, scoped, tag = 'internal scratch']
  %s0 = inlined_call_operand.hbm [shape: f32[3,8,128], index: 0, kind: input, shape index: {}]
  %s1 = inlined_call_operand.vmem [shape: f32[3,4], index: 1, kind: input, shape index: {}]
  %s2 = inlined_call_operand.vmem [shape: f32[1,4], index: 2, kind: input, shape index: {}]
  %s3 = inlined_call_operand.vmem [shape: f32[4,8], index: 3, kind: input, shape index: {}]
  %s4 = inlined_call_operand.vmem [shape: f32[1,8], index: 4, kind: input, shape index: {}]
  %s5 = inlined_call_operand.vmem [shape: f32[8,2], index: 5, kind: input, shape index: {}]
  %s6 = inlined_call_operand.vmem [shape: f32[1,2], index: 6, kind: input, shape index: {}]
  %s7 = inlined_call_operand.hbm [shape: f32[2,8,128], index: 7, kind: output, shape index: {}]
  %s8 = sld [smem:[#allocation0]]
  $region66: #{tpu_custom_call.1} parent=0
    _
  %s10 = ssub.s32 1, %s8
  %s11 = scalar_select 0, %s10, %s8
  $region1: #{tpu_custom_call.1} parent=0
    #allocation2 [shape = 'u8[12288]{0}', space=vmem, size = 0x3000, scoped, tag = 'input window, operand 0, single buffered']
    #allocation3 [shape = 's32[1]{0}', space=sflag, size = 0x4, scoped, tag = 'scoped memory for tpu_custom_call.1']
    #allocation4 [shape = 's32[1]{0}', space=sflag, size = 0x4, scoped, tag = 'scoped memory for tpu_custom_call.1']
    #allocation5 [shape = 's32[1]{0}', space=sflag, size = 0x4, scoped, tag = 'scoped memory for tpu_custom_call.1']
    #allocation6 [shape = 'u8[2048]{0}', space=smem, size = 0x800, scoped, tag = 'input window, operand 1, single buffered']
    #allocation7 [shape = 'u8[512]{0}', space=smem, size = 0x200, scoped, tag = 'input window, operand 2, single buffered']
    #allocation8 [shape = 's32[1]{0}', space=sflag, size = 0x4, scoped, tag = 'scoped memory for tpu_custom_call.1']
    #allocation9 [shape = 'u8[2048]{0}', space=smem, size = 0x800, scoped, tag = 'input window, operand 3, single buffered']
    #allocation10 [shape = 'u8[512]{0}', space=smem, size = 0x200, scoped, tag = 'input window, operand 4, single buffered']
    #allocation11 [shape = 's32[1]{0}', space=sflag, size = 0x4, scoped, tag = 'scoped memory for tpu_custom_call.1']
    #allocation12 [shape = 'u8[4096]{0}', space=smem, size = 0x1000, scoped, tag = 'input window, operand 5, single buffered']
    #allocation13 [shape = 'u8[512]{0}', space=smem, size = 0x200, scoped, tag = 'input window, operand 6, single buffered']
    #allocation14 [shape = 's32[1]{0}', space=sflag, size = 0x4, scoped, tag = 'scoped memory for tpu_custom_call.1']
    #allocation15 [shape = 'u8[8192]{0}', space=vmem, size = 0x2000, scoped, tag = 'output window, operand 0, single buffered']
    %12 = vsyncpa [#allocation3], 0
    %13 = vsyncpa [#allocation5], 0
    %14 = vsyncpa [#allocation8], 0
    %15 = vsyncpa [#allocation11], 0
    %16 = vsyncpa [#allocation14], 0
    %17 = vsyncpa [#allocation4], 0
    // Predicated region
    $region2: #{tpu_custom_call.1} parent=1 // pred_check
      _
    $region3: #{tpu_custom_call.1} parent=1 // pred_check_branch
      %19 = sbr.rel (0) target = $region5
    $region4: #{tpu_custom_call.1} parent=1 // pred_region
      %s21 = ssub.s32 384, 384
      %22 = vsyncadd [#allocation3], %s21
      %s23 = sshll.u32 [#allocation2], 4
      %s24 = int_to_ptr.vmem [resolvable:$true] %s23
      %29 = dma.hbm_to_vmem [thread:$0]  %s0, 384, %s24, [#allocation3], 128, 128, 8
    $region5: #{tpu_custom_call.1} parent=1 // pred_fallthru
      _
    // Predicated region
    $region6: #{tpu_custom_call.1} parent=1 // pred_check
      _
    $region7: #{tpu_custom_call.1} parent=1 // pred_check_branch
      %31 = sbr.rel (0) target = $region9
    $region8: #{tpu_custom_call.1} parent=1 // pred_region
      %s33 = ssub.s32 64, 64
      %34 = vsyncadd [#allocation5], %s33
      %s36 = sshll.u32 %s1, 4
      %s37 = int_to_ptr.vmem [resolvable:$true] %s36
      %39 = dma.vmem_to_smem %s37, 64, [#allocation6], [#allocation5]
    $region9: #{tpu_custom_call.1} parent=1 // pred_fallthru
      _
    // Predicated region
    $region10: #{tpu_custom_call.1} parent=1 // pred_check
      _
    $region11: #{tpu_custom_call.1} parent=1 // pred_check_branch
      %41 = sbr.rel (0) target = $region13
    $region12: #{tpu_custom_call.1} parent=1 // pred_region
      %s43 = ssub.s32 16, 16
      %44 = vsyncadd [#allocation8], %s43
      %s46 = sshll.u32 %s2, 4
      %s47 = int_to_ptr.vmem [resolvable:$true] %s46
      %49 = dma.vmem_to_smem %s47, 16, [#allocation7], [#allocation8]
    $region13: #{tpu_custom_call.1} parent=1 // pred_fallthru
      _
    // Predicated region
    $region14: #{tpu_custom_call.1} parent=1 // pred_check
      _
    $region15: #{tpu_custom_call.1} parent=1 // pred_check_branch
      %51 = sbr.rel (0) target = $region17
    $region16: #{tpu_custom_call.1} parent=1 // pred_region
      %s53 = ssub.s32 64, 64
      %54 = vsyncadd [#allocation8], %s53
      %s56 = sshll.u32 %s3, 4
      %s57 = int_to_ptr.vmem [resolvable:$true] %s56
      %59 = dma.vmem_to_smem %s57, 64, [#allocation9], [#allocation8]
    $region17: #{tpu_custom_call.1} parent=1 // pred_fallthru
      _
    // Predicated region
    $region18: #{tpu_custom_call.1} parent=1 // pred_check
      _
    $region19: #{tpu_custom_call.1} parent=1 // pred_check_branch
      %61 = sbr.rel (0) target = $region21
    $region20: #{tpu_custom_call.1} parent=1 // pred_region
      %s63 = ssub.s32 16, 16
      %64 = vsyncadd [#allocation11], %s63
      %s66 = sshll.u32 %s4, 4
      %s67 = int_to_ptr.vmem [resolvable:$true] %s66
      %69 = dma.vmem_to_smem %s67, 16, [#allocation10], [#allocation11]
    $region21: #{tpu_custom_call.1} parent=1 // pred_fallthru
      _
    // Predicated region
    $region22: #{tpu_custom_call.1} parent=1 // pred_check
      _
    $region23: #{tpu_custom_call.1} parent=1 // pred_check_branch
      %71 = sbr.rel (0) target = $region25
    $region24: #{tpu_custom_call.1} parent=1 // pred_region
      %s73 = ssub.s32 128, 128
      %74 = vsyncadd [#allocation11], %s73
      %s76 = sshll.u32 %s5, 4
      %s77 = int_to_ptr.vmem [resolvable:$true] %s76
      %79 = dma.vmem_to_smem %s77, 128, [#allocation12], [#allocation11]
    $region25: #{tpu_custom_call.1} parent=1 // pred_fallthru
      _
    // Predicated region
    $region26: #{tpu_custom_call.1} parent=1 // pred_check
      _
    $region27: #{tpu_custom_call.1} parent=1 // pred_check_branch
      %81 = sbr.rel (0) target = $region29
    $region28: #{tpu_custom_call.1} parent=1 // pred_region
      %s83 = ssub.s32 16, 16
      %84 = vsyncadd [#allocation14], %s83
      %s86 = sshll.u32 %s6, 4
      %s87 = int_to_ptr.vmem [resolvable:$true] %s86
      %89 = dma.vmem_to_smem %s87, 16, [#allocation13], [#allocation14]
    $region29: #{tpu_custom_call.1} parent=1 // pred_fallthru
      _
    // Predicated region
    $region30: #{tpu_custom_call.1} parent=1 // pred_check
      _
    $region31: #{tpu_custom_call.1} parent=1 // pred_check_branch
      %91 = sbr.rel (0) target = $region33
    $region32: #{tpu_custom_call.1} parent=1 // pred_region
      %92 = dma.done [#allocation3], 384
    $region33: #{tpu_custom_call.1} parent=1 // pred_fallthru
      _
    // Predicated region
    $region34: #{tpu_custom_call.1} parent=1 // pred_check
      _
    $region35: #{tpu_custom_call.1} parent=1 // pred_check_branch
      %94 = sbr.rel (0) target = $region37
    $region36: #{tpu_custom_call.1} parent=1 // pred_region
      %95 = dma.done [#allocation5], 64
    $region37: #{tpu_custom_call.1} parent=1 // pred_fallthru
      _
    // Predicated region
    $region38: #{tpu_custom_call.1} parent=1 // pred_check
      _
    $region39: #{tpu_custom_call.1} parent=1 // pred_check_branch
      %97 = sbr.rel (0) target = $region41
    $region40: #{tpu_custom_call.1} parent=1 // pred_region
      %98 = dma.done [#allocation8], 16
    $region41: #{tpu_custom_call.1} parent=1 // pred_fallthru
      _
    // Predicated region
    $region42: #{tpu_custom_call.1} parent=1 // pred_check
      _
    $region43: #{tpu_custom_call.1} parent=1 // pred_check_branch
      %100 = sbr.rel (0) target = $region45
    $region44: #{tpu_custom_call.1} parent=1 // pred_region
      %101 = dma.done [#allocation8], 64
    $region45: #{tpu_custom_call.1} parent=1 // pred_fallthru
      _
    // Predicated region
    $region46: #{tpu_custom_call.1} parent=1 // pred_check
      _
    $region47: #{tpu_custom_call.1} parent=1 // pred_check_branch
      %103 = sbr.rel (0) target = $region49
    $region48: #{tpu_custom_call.1} parent=1 // pred_region
      %104 = dma.done [#allocation11], 16
    $region49: #{tpu_custom_call.1} parent=1 // pred_fallthru
      _
    // Predicated region
    $region50: #{tpu_custom_call.1} parent=1 // pred_check
      _
    $region51: #{tpu_custom_call.1} parent=1 // pred_check_branch
      %106 = sbr.rel (0) target = $region53
    $region52: #{tpu_custom_call.1} parent=1 // pred_region
      %107 = dma.done [#allocation11], 128
    $region53: #{tpu_custom_call.1} parent=1 // pred_fallthru
      _
    // Predicated region
    $region54: #{tpu_custom_call.1} parent=1 // pred_check
      _
    $region55: #{tpu_custom_call.1} parent=1 // pred_check_branch
      %109 = sbr.rel (0) target = $region57
    $region56: #{tpu_custom_call.1} parent=1 // pred_region
      %110 = dma.done [#allocation14], 16
    $region57: #{tpu_custom_call.1} parent=1 // pred_fallthru
      _
    %111 = sfence
    %v112 = vld [vmem:[#allocation2] sm:$0xff]
    %s113 = scalar_lea.vmem [#allocation2], 8
    %v114 = vld [vmem:[%s113] sm:$0xff]
    %s115 = scalar_lea.vmem [#allocation2], 16
    %v116 = vld [vmem:[%s115] sm:$0xff]
    %s117 = sld [smem:[#allocation6]]
    %v118 = vstv %s117
    %v119 = vmul.f32 %v112, %v118
    %s120 = sld [smem:[#allocation7]]
    %v121 = vstv %s120
    %v122 = vadd.f32 %v119, %v121
    %s123 = sld [smem:[#allocation6 + $0x80]]
    %v124 = vstv %s123
    %v125 = vmul.f32 %v114, %v124
    %v126 = vadd.f32 %v122, %v125
    %s127 = sld [smem:[#allocation6 + $0x100]]
    %v128 = vstv %s127
    %v129 = vmul.f32 %v116, %v128
    %v130 = vadd.f32 %v126, %v129
    %v131 = vmax.f32 %v130, 0.0
    %s132 = sld [smem:[#allocation6 + $0x1]]
    %v133 = vstv %s132
    %v134 = vmul.f32 %v112, %v133
    %s135 = sld [smem:[#allocation7 + $0x1]]
    %v136 = vstv %s135
    %v137 = vadd.f32 %v134, %v136
    %s138 = sld [smem:[#allocation6 + $0x81]]
    %v139 = vstv %s138
    %v140 = vmul.f32 %v114, %v139
    %v141 = vadd.f32 %v137, %v140
    %s142 = sld [smem:[#allocation6 + $0x101]]
    %v143 = vstv %s142
    %v144 = vmul.f32 %v116, %v143
    %v145 = vadd.f32 %v141, %v144
    %v146 = vmax.f32 %v145, 0.0
    %s147 = sld [smem:[#allocation6 + $0x2]]
    %v148 = vstv %s147
    %v149 = vmul.f32 %v112, %v148
    %s150 = sld [smem:[#allocation7 + $0x2]]
    %v151 = vstv %s150
    %v152 = vadd.f32 %v149, %v151
    %s153 = sld [smem:[#allocation6 + $0x82]]
    %v154 = vstv %s153
    %v155 = vmul.f32 %v114, %v154
    %v156 = vadd.f32 %v152, %v155
    %s157 = sld [smem:[#allocation6 + $0x102]]
    %v158 = vstv %s157
    %v159 = vmul.f32 %v116, %v158
    %v160 = vadd.f32 %v156, %v159
    %v161 = vmax.f32 %v160, 0.0
    %s162 = sld [smem:[#allocation6 + $0x3]]
    %v163 = vstv %s162
    %v164 = vmul.f32 %v112, %v163
    %s165 = sld [smem:[#allocation7 + $0x3]]
    %v166 = vstv %s165
    %v167 = vadd.f32 %v164, %v166
    %s168 = sld [smem:[#allocation6 + $0x83]]
    %v169 = vstv %s168
    %v170 = vmul.f32 %v114, %v169
    %v171 = vadd.f32 %v167, %v170
    %s172 = sld [smem:[#allocation6 + $0x103]]
    %v173 = vstv %s172
    %v174 = vmul.f32 %v116, %v173
    %v175 = vadd.f32 %v171, %v174
    %v176 = vmax.f32 %v175, 0.0
    %s177 = sld [smem:[#allocation9]]
    %v178 = vstv %s177
    %v179 = vmul.f32 %v131, %v178
    %s180 = sld [smem:[#allocation10]]
    %v181 = vstv %s180
    %v182 = vadd.f32 %v179, %v181
    %s183 = sld [smem:[#allocation9 + $0x80]]
    %v184 = vstv %s183
    %v185 = vmul.f32 %v146, %v184
    %v186 = vadd.f32 %v182, %v185
    %s187 = sld [smem:[#allocation9 + $0x100]]
    %v188 = vstv %s187
    %v189 = vmul.f32 %v161, %v188
    %v190 = vadd.f32 %v186, %v189
    %s191 = sld [smem:[#allocation9 + $0x180]]
    %v192 = vstv %s191
    %v193 = vmul.f32 %v176, %v192
    %v194 = vadd.f32 %v190, %v193
    %v195 = vmax.f32 %v194, 0.0
    %s196 = sld [smem:[#allocation12]]
    %v197 = vstv %s196
    %v198 = vmul.f32 %v195, %v197
    %s199 = sld [smem:[#allocation13]]
    %v200 = vstv %s199
    %v201 = vadd.f32 %v198, %v200
    %s202 = sld [smem:[#allocation12 + $0x1]]
    %v203 = vstv %s202
    %v204 = vmul.f32 %v195, %v203
    %s205 = sld [smem:[#allocation13 + $0x1]]
    %v206 = vstv %s205
    %v207 = vadd.f32 %v204, %v206
    %s208 = sld [smem:[#allocation9 + $0x1]]
    %v209 = vstv %s208
    %v210 = vmul.f32 %v131, %v209
    %s211 = sld [smem:[#allocation10 + $0x1]]
    %v212 = vstv %s211
    %v213 = vadd.f32 %v210, %v212
    %s214 = sld [smem:[#allocation9 + $0x81]]
    %v215 = vstv %s214
    %v216 = vmul.f32 %v146, %v215
    %v217 = vadd.f32 %v213, %v216
    %s218 = sld [smem:[#allocation9 + $0x101]]
    %v219 = vstv %s218
    %v220 = vmul.f32 %v161, %v219
    %v221 = vadd.f32 %v217, %v220
    %s222 = sld [smem:[#allocation9 + $0x181]]
    %v223 = vstv %s222
    %v224 = vmul.f32 %v176, %v223
    %v225 = vadd.f32 %v221, %v224
    %v226 = vmax.f32 %v225, 0.0
    %s227 = sld [smem:[#allocation12 + $0x80]]
    %v228 = vstv %s227
    %v229 = vmul.f32 %v226, %v228
    %v230 = vadd.f32 %v201, %v229
    %s231 = sld [smem:[#allocation12 + $0x81]]
    %v232 = vstv %s231
    %v233 = vmul.f32 %v226, %v232
    %v234 = vadd.f32 %v207, %v233
    %s235 = sld [smem:[#allocation9 + $0x2]]
    %v236 = vstv %s235
    %v237 = vmul.f32 %v131, %v236
    %s238 = sld [smem:[#allocation10 + $0x2]]
    %v239 = vstv %s238
    %v240 = vadd.f32 %v237, %v239
    %s241 = sld [smem:[#allocation9 + $0x82]]
    %v242 = vstv %s241
    %v243 = vmul.f32 %v146, %v242
    %v244 = vadd.f32 %v240, %v243
    %s245 = sld [smem:[#allocation9 + $0x102]]
    %v246 = vstv %s245
    %v247 = vmul.f32 %v161, %v246
    %v248 = vadd.f32 %v244, %v247
    %s249 = sld [smem:[#allocation9 + $0x182]]
    %v250 = vstv %s249
    %v251 = vmul.f32 %v176, %v250
    %v252 = vadd.f32 %v248, %v251
    %v253 = vmax.f32 %v252, 0.0
    %s254 = sld [smem:[#allocation12 + $0x100]]
    %v255 = vstv %s254
    %v256 = vmul.f32 %v253, %v255
    %v257 = vadd.f32 %v230, %v256
    %s258 = sld [smem:[#allocation12 + $0x101]]
    %v259 = vstv %s258
    %v260 = vmul.f32 %v253, %v259
    %v261 = vadd.f32 %v234, %v260
    %s262 = sld [smem:[#allocation9 + $0x3]]
    %v263 = vstv %s262
    %v264 = vmul.f32 %v131, %v263
    %s265 = sld [smem:[#allocation10 + $0x3]]
    %v266 = vstv %s265
    %v267 = vadd.f32 %v264, %v266
    %s268 = sld [smem:[#allocation9 + $0x83]]
    %v269 = vstv %s268
    %v270 = vmul.f32 %v146, %v269
    %v271 = vadd.f32 %v267, %v270
    %s272 = sld [smem:[#allocation9 + $0x103]]
    %v273 = vstv %s272
    %v274 = vmul.f32 %v161, %v273
    %v275 = vadd.f32 %v271, %v274
    %s276 = sld [smem:[#allocation9 + $0x183]]
    %v277 = vstv %s276
    %v278 = vmul.f32 %v176, %v277
    %v279 = vadd.f32 %v275, %v278
    %v280 = vmax.f32 %v279, 0.0
    %s281 = sld [smem:[#allocation12 + $0x180]]
    %v282 = vstv %s281
    %v283 = vmul.f32 %v280, %v282
    %v284 = vadd.f32 %v257, %v283
    %s285 = sld [smem:[#allocation12 + $0x181]]
    %v286 = vstv %s285
    %v287 = vmul.f32 %v280, %v286
    %v288 = vadd.f32 %v261, %v287
    %s289 = sld [smem:[#allocation9 + $0x4]]
    %v290 = vstv %s289
    %v291 = vmul.f32 %v131, %v290
    %s292 = sld [smem:[#allocation10 + $0x4]]
    %v293 = vstv %s292
    %v294 = vadd.f32 %v291, %v293
    %s295 = sld [smem:[#allocation9 + $0x84]]
    %v296 = vstv %s295
    %v297 = vmul.f32 %v146, %v296
    %v298 = vadd.f32 %v294, %v297
    %s299 = sld [smem:[#allocation9 + $0x104]]
    %v300 = vstv %s299
    %v301 = vmul.f32 %v161, %v300
    %v302 = vadd.f32 %v298, %v301
    %s303 = sld [smem:[#allocation9 + $0x184]]
    %v304 = vstv %s303
    %v305 = vmul.f32 %v176, %v304
    %v306 = vadd.f32 %v302, %v305
    %v307 = vmax.f32 %v306, 0.0
    %s308 = sld [smem:[#allocation12 + $0x200]]
    %v309 = vstv %s308
    %v310 = vmul.f32 %v307, %v309
    %v311 = vadd.f32 %v284, %v310
    %s312 = sld [smem:[#allocation12 + $0x201]]
    %v313 = vstv %s312
    %v314 = vmul.f32 %v307, %v313
    %v315 = vadd.f32 %v288, %v314
    %s316 = sld [smem:[#allocation9 + $0x5]]
    %v317 = vstv %s316
    %v318 = vmul.f32 %v131, %v317
    %s319 = sld [smem:[#allocation10 + $0x5]]
    %v320 = vstv %s319
    %v321 = vadd.f32 %v318, %v320
    %s322 = sld [smem:[#allocation9 + $0x85]]
    %v323 = vstv %s322
    %v324 = vmul.f32 %v146, %v323
    %v325 = vadd.f32 %v321, %v324
    %s326 = sld [smem:[#allocation9 + $0x105]]
    %v327 = vstv %s326
    %v328 = vmul.f32 %v161, %v327
    %v329 = vadd.f32 %v325, %v328
    %s330 = sld [smem:[#allocation9 + $0x185]]
    %v331 = vstv %s330
    %v332 = vmul.f32 %v176, %v331
    %v333 = vadd.f32 %v329, %v332
    %v334 = vmax.f32 %v333, 0.0
    %s335 = sld [smem:[#allocation12 + $0x280]]
    %v336 = vstv %s335
    %v337 = vmul.f32 %v334, %v336
    %v338 = vadd.f32 %v311, %v337
    %s339 = sld [smem:[#allocation12 + $0x281]]
    %v340 = vstv %s339
    %v341 = vmul.f32 %v334, %v340
    %v342 = vadd.f32 %v315, %v341
    %s343 = sld [smem:[#allocation9 + $0x6]]
    %v344 = vstv %s343
    %v345 = vmul.f32 %v131, %v344
    %s346 = sld [smem:[#allocation10 + $0x6]]
    %v347 = vstv %s346
    %v348 = vadd.f32 %v345, %v347
    %s349 = sld [smem:[#allocation9 + $0x86]]
    %v350 = vstv %s349
    %v351 = vmul.f32 %v146, %v350
    %v352 = vadd.f32 %v348, %v351
    %s353 = sld [smem:[#allocation9 + $0x106]]
    %v354 = vstv %s353
    %v355 = vmul.f32 %v161, %v354
    %v356 = vadd.f32 %v352, %v355
    %s357 = sld [smem:[#allocation9 + $0x186]]
    %v358 = vstv %s357
    %v359 = vmul.f32 %v176, %v358
    %v360 = vadd.f32 %v356, %v359
    %v361 = vmax.f32 %v360, 0.0
    %s362 = sld [smem:[#allocation12 + $0x300]]
    %v363 = vstv %s362
    %v364 = vmul.f32 %v361, %v363
    %v365 = vadd.f32 %v338, %v364
    %s366 = sld [smem:[#allocation12 + $0x301]]
    %v367 = vstv %s366
    %v368 = vmul.f32 %v361, %v367
    %v369 = vadd.f32 %v342, %v368
    %s370 = sld [smem:[#allocation9 + $0x7]]
    %v371 = vstv %s370
    %v372 = vmul.f32 %v131, %v371
    %s373 = sld [smem:[#allocation10 + $0x7]]
    %v374 = vstv %s373
    %v375 = vadd.f32 %v372, %v374
    %s376 = sld [smem:[#allocation9 + $0x87]]
    %v377 = vstv %s376
    %v378 = vmul.f32 %v146, %v377
    %v379 = vadd.f32 %v375, %v378
    %s380 = sld [smem:[#allocation9 + $0x107]]
    %v381 = vstv %s380
    %v382 = vmul.f32 %v161, %v381
    %v383 = vadd.f32 %v379, %v382
    %s384 = sld [smem:[#allocation9 + $0x187]]
    %v385 = vstv %s384
    %v386 = vmul.f32 %v176, %v385
    %v387 = vadd.f32 %v383, %v386
    %v388 = vmax.f32 %v387, 0.0
    %s389 = sld [smem:[#allocation12 + $0x380]]
    %v390 = vstv %s389
    %v391 = vmul.f32 %v388, %v390
    %v392 = vadd.f32 %v365, %v391
    %s393 = sld [smem:[#allocation12 + $0x381]]
    %v394 = vstv %s393
    %v395 = vmul.f32 %v388, %v394
    %v396 = vadd.f32 %v369, %v395
    %v397 = vsub.f32 %v396, %v392
    %v398 = vand.u32 2147483647, %v397
    %v399 = vsub.f32 0.0, %v398
    %v400 = vmul.f32 %v399, 1.442695
    %v401 = vpow.pop %v400
    %v402 = vadd.f32 %v401, 1.0
    %v403 = vrcp.pop %v402
    %v404 = vmul.f32 %v402, %v403
    %v405 = vsub.f32 2.0, %v404
    %v406 = vmul.f32 %v403, %v405
    %vm407 = vcmp.ge.f32.partialorder %v397, 0.0
    %v408 = vmul.f32 %v401, %v406
    %v409 = vsel %vm407, %v406, %v408
    %v410 = vsel %vm407, %v408, %v406
    %411 = vst [vmem:[#allocation15] sm:$0xff] %v410
    %s412 = scalar_lea.vmem [#allocation15], 8
    %413 = vst [vmem:[%s412] sm:$0xff] %v409
    // Predicated region
    $region58: #{tpu_custom_call.1} parent=1 // pred_check
      _
    $region59: #{tpu_custom_call.1} parent=1 // pred_check_branch
      %415 = sbr.rel (0) target = $region61
    $region60: #{tpu_custom_call.1} parent=1 // pred_region
      %s417 = ssub.s32 256, 256
      %418 = vsyncadd [#allocation4], %s417
      %s419 = sshll.u32 [#allocation15], 4
      %s420 = int_to_ptr.vmem [resolvable:$true] %s419
      %425 = dma.vmem_to_hbm [thread:$0]  %s420, 256, %s7, [#allocation4], 128, 128, 8
    $region61: #{tpu_custom_call.1} parent=1 // pred_fallthru
      _
    // Predicated region
    $region62: #{tpu_custom_call.1} parent=1 // pred_check
      _
    $region63: #{tpu_custom_call.1} parent=1 // pred_check_branch
      %427 = sbr.rel (0) target = $region65
    $region64: #{tpu_custom_call.1} parent=1 // pred_region
      %428 = dma.done [#allocation4], 256
    $region65: #{tpu_custom_call.1} parent=1 // pred_fallthru
      _
    %429 = vsyncpa [#allocation3], 1
    %430 = vsyncpa [#allocation4], 1
    %431 = vsyncpa [#allocation5], 1
    %432 = vsyncpa [#allocation8], 1
    %433 = vsyncpa [#allocation11], 1
    %434 = vsyncpa [#allocation14], 1

</llo_original>
